<compile_context>
chip_gen: v5e
topology: v5e:2x2
jax: 0.10.0
libtpu: 0.0.40
codegen_flags: <defaults>
</compile_context>

<pallas_src>
import jax
import jax.numpy as jnp
from jax.experimental import pallas as pl
from jax.experimental.pallas import tpu as pltpu

EPS = 1e-5
LANES = 128

# Row offsets inside the packed parameter slab (all sublane-aligned, mult of 8).
_OFF_W1 = 0      # rows   0..7  : w1 [2,16]   padded to [ 8,128]
_OFF_W2 = 8      # rows   8..23 : w2 [16,32]  padded to [16,128]
_OFF_W3 = 24     # rows  24..55 : w3 [32,32]  padded to [32,128]
_OFF_W4 = 56     # rows  56..87 : w4 [32,32]  padded to [32,128]
_OFF_W5 = 88     # rows  88..119: w5 [32,2]   padded to [32,128]
_OFF_V = 120     # rows 120..135: g1,be1,g2,be2,g3,be3,g4,be4,b5 (one row each)
_SLAB_ROWS = 136


def teacher_kernel(x_ref, p_ref, o_ref):
    x = x_ref[...]                                   # (N, 2)
    n = x.shape[0]
    inv_n = 1.0 / n

    # Small vector params (16 rows = a couple of vregs) — cheap to keep live.
    v = p_ref[pl.ds(_OFF_V, 16), :]                  # (16, 128)
    g1, be1 = v[0:1, :], v[1:2, :]
    g2, be2 = v[2:3, :], v[3:4, :]
    g3, be3 = v[4:5, :], v[5:6, :]
    g4, be4 = v[6:7, :], v[7:8, :]
    b5 = v[8:9, :]

    def bn(h, g, be, relu):
        # Two independent reductions -> var = E[h^2] - mu^2 (clamped), one FMA.
        mu = jnp.sum(h, axis=0, keepdims=True) * inv_n
        ex2 = jnp.sum(h * h, axis=0, keepdims=True) * inv_n
        var = jnp.maximum(ex2 - mu * mu, 0.0)
        s = jax.lax.rsqrt(var + EPS) * g             # (1, 128)
        t = be - mu * s                              # (1, 128)
        y = h * s + t
        return jnp.maximum(y, 0.0) if relu else y

    # ---- layers1 ----
    # Linear(2,16): K=2 contraction as VPU FMAs (bias cancelled by BN).
    w1 = p_ref[pl.ds(_OFF_W1, 8), :]                 # (8, 128); rows 0,1 real
    h = x[:, 0:1] * w1[0:1, :] + x[:, 1:2] * w1[1:2, :]       # (N, 128)
    h = bn(h, g1, be1, relu=True)
    # Linear(16,32): K=16 matmul; weight read at its use site (short live range).
    h = bn(jnp.dot(h[:, :16], p_ref[pl.ds(_OFF_W2, 16), :],
                   preferred_element_type=jnp.float32), g2, be2, relu=True)

    identity = h

    # ---- layers2 ----
    h = bn(jnp.dot(h[:, :32], p_ref[pl.ds(_OFF_W3, 32), :],
                   preferred_element_type=jnp.float32), g3, be3, relu=True)
    h = bn(jnp.dot(h[:, :32], p_ref[pl.ds(_OFF_W4, 32), :],
                   preferred_element_type=jnp.float32), g4, be4, relu=False)

    # residual add
    h = h + identity

    # ---- layers3: ReLU -> Linear(32, 2) (lane-dense padded output) ----
    h = jnp.maximum(h, 0.0)
    o_ref[...] = jnp.dot(h[:, :32], p_ref[pl.ds(_OFF_W5, 32), :],
                         preferred_element_type=jnp.float32) + b5


def _pad_block(a, rows, cols=LANES):
    r, c = a.shape
    return jnp.pad(a, ((0, rows - r), (0, cols - c)))


def pack_params(params):
    """Pack the 18 PyTorch-style params into one [136, 128] f32 slab.
    Biases b1..b4 are intentionally omitted (cancelled by training-mode BN).
    Call ONCE and reuse the slab across forward calls."""
    (w1, _b1, g1, be1,
     w2, _b2, g2, be2,
     w3, _b3, g3, be3,
     w4, _b4, g4, be4,
     w5, b5) = params

    vec_rows = [g1, be1, g2, be2, g3, be3, g4, be4, b5]
    vec_block = jnp.concatenate(
        [jnp.pad(r, ((0, 0), (0, LANES - r.shape[1]))) for r in vec_rows], axis=0)
    vec_block = jnp.pad(vec_block, ((0, 16 - vec_block.shape[0]), (0, 0)))

    slab = jnp.concatenate([
        _pad_block(w1, 8),      # [ 8,128]
        _pad_block(w2, 16),     # [16,128]
        _pad_block(w3, 32),     # [32,128]
        _pad_block(w4, 32),     # [32,128]
        _pad_block(w5, 32),     # [32,128]
        vec_block,              # [16,128]
    ], axis=0)
    assert slab.shape == (_SLAB_ROWS, LANES), slab.shape
    return slab


def teacher_forward(x, slab):
    """Forward pass. `slab` is the cached output of pack_params()."""
    n = x.shape[0]
    out_pad = pl.pallas_call(
        teacher_kernel,
        out_shape=jax.ShapeDtypeStruct((n, LANES), jnp.float32),
        in_specs=[pl.BlockSpec(memory_space=pltpu.MemorySpace.VMEM),
                  pl.BlockSpec(memory_space=pltpu.MemorySpace.VMEM)],
        out_specs=pl.BlockSpec(memory_space=pltpu.MemorySpace.VMEM),
    )(x, slab)
    return out_pad[:, :2]


def make_params(key):
    """Deterministic parameter construction.  Linear weights stored as
    [Fin, Fout] (transposed vs. PyTorch's [out, in]); BN gamma/beta as [1, F]."""
    dims = [(2, 16), (16, 32), (32, 32), (32, 32), (32, 2)]
    bn_dims = [16, 32, 32, 32]
    keys = jax.random.split(key, 2 * len(dims) + 2 * len(bn_dims))
    ki = iter(range(len(keys)))

    params = []
    for li, (fin, fout) in enumerate(dims):
        w = 0.1 * jax.random.normal(keys[next(ki)], (fin, fout), jnp.float32)
        b = 0.1 * jax.random.normal(keys[next(ki)], (1, fout), jnp.float32)
        params.append(w)
        params.append(b)
        if li < len(bn_dims):
            g = 1.0 + 0.05 * jax.random.normal(keys[next(ki)], (1, fout), jnp.float32)
            be = 0.05 * jax.random.normal(keys[next(ki)], (1, fout), jnp.float32)
            params.append(g)
            params.append(be)
    return params


def teacher_reference(x, params):
    """Pure-JAX reference of the PyTorch forward (with biases, two-pass BN)."""
    (w1, b1, g1, be1,
     w2, b2, g2, be2,
     w3, b3, g3, be3,
     w4, b4, g4, be4,
     w5, b5) = params

    def lin(h, w, b):
        return h @ w + b

    def bn(h, g, be):
        mu = jnp.mean(h, axis=0, keepdims=True)
        var = jnp.mean((h - mu) ** 2, axis=0, keepdims=True)
        return (h - mu) / jnp.sqrt(var + EPS) * g + be

    h = jax.nn.relu(bn(lin(x, w1, b1), g1, be1))
    h = jax.nn.relu(bn(lin(h, w2, b2), g2, be2))
    identity = h
    h = jax.nn.relu(bn(lin(h, w3, b3), g3, be3))
    h = bn(lin(h, w4, b4), g4, be4)
    h = h + identity
    return lin(jax.nn.relu(h), w5, b5)


if __name__ == "__main__":
    key = jax.random.PRNGKey(0)
    k_x, k_p = jax.random.split(key)

    N = 8  # batch
    x = jax.random.normal(k_x, (N, 2), jnp.float32)
    params = make_params(k_p)

    # Pack parameters ONCE (cached slab); forward only does the kernel call.
    slab = jax.block_until_ready(pack_params(params))
    fwd = jax.jit(teacher_forward)

    out = fwd(x, slab)
    out = jax.block_until_ready(out)

    ref = teacher_reference(x, params)
    assert out.shape == (N, 2), out.shape
    # Bias-drop + E[h^2]-mu^2 variance form are exact mathematically but differ
    # at fp-rounding level from the two-pass reference -> relaxed tolerance.
    assert jnp.allclose(out, ref, atol=2e-3, rtol=2e-3), (out, ref)

    print("KERNEL_OK")
</pallas_src>

<mosaic_0001>
module attributes {stable_mosaic.version = 11 : i64} {
  func.func @teacher_kernel(%arg0: memref<8x2xf32, #tpu.memory_space<vmem>>, %arg1: memref<136x128xf32, #tpu.memory_space<vmem>>, %arg2: memref<8x128xf32, #tpu.memory_space<vmem>>) attributes {dimension_semantics = [], scalar_prefetch = 0 : i64, scratch_operands = 0 : i64, tpu.core_type = #tpu.core_type<tc>} {
    %c0 = arith.constant 0 : index
    %c0_0 = arith.constant 0 : index
    %0 = vector.load %arg0[%c0, %c0_0] : memref<8x2xf32, #tpu.memory_space<vmem>>, vector<8x2xf32>
    %c120 = arith.constant 120 : index
    %c0_1 = arith.constant 0 : index
    %1 = vector.load %arg1[%c120, %c0_1] : memref<136x128xf32, #tpu.memory_space<vmem>>, vector<16x128xf32>
    %2 = vector.extract_strided_slice %1 {offsets = [0, 0], sizes = [1, 128], strides = [1, 1]} : vector<16x128xf32> to vector<1x128xf32>
    %3 = vector.extract_strided_slice %1 {offsets = [1, 0], sizes = [1, 128], strides = [1, 1]} : vector<16x128xf32> to vector<1x128xf32>
    %4 = vector.extract_strided_slice %1 {offsets = [2, 0], sizes = [1, 128], strides = [1, 1]} : vector<16x128xf32> to vector<1x128xf32>
    %5 = vector.extract_strided_slice %1 {offsets = [3, 0], sizes = [1, 128], strides = [1, 1]} : vector<16x128xf32> to vector<1x128xf32>
    %6 = vector.extract_strided_slice %1 {offsets = [4, 0], sizes = [1, 128], strides = [1, 1]} : vector<16x128xf32> to vector<1x128xf32>
    %7 = vector.extract_strided_slice %1 {offsets = [5, 0], sizes = [1, 128], strides = [1, 1]} : vector<16x128xf32> to vector<1x128xf32>
    %8 = vector.extract_strided_slice %1 {offsets = [6, 0], sizes = [1, 128], strides = [1, 1]} : vector<16x128xf32> to vector<1x128xf32>
    %9 = vector.extract_strided_slice %1 {offsets = [7, 0], sizes = [1, 128], strides = [1, 1]} : vector<16x128xf32> to vector<1x128xf32>
    %10 = vector.extract_strided_slice %1 {offsets = [8, 0], sizes = [1, 128], strides = [1, 1]} : vector<16x128xf32> to vector<1x128xf32>
    %c0_2 = arith.constant 0 : index
    %c0_3 = arith.constant 0 : index
    %11 = vector.load %arg1[%c0_2, %c0_3] : memref<136x128xf32, #tpu.memory_space<vmem>>, vector<8x128xf32>
    %12 = vector.extract_strided_slice %0 {offsets = [0, 0], sizes = [8, 1], strides = [1, 1]} : vector<8x2xf32> to vector<8x1xf32>
    %13 = vector.extract_strided_slice %11 {offsets = [0, 0], sizes = [1, 128], strides = [1, 1]} : vector<8x128xf32> to vector<1x128xf32>
    %14 = vector.broadcast %12 : vector<8x1xf32> to vector<8x128xf32>
    %15 = vector.broadcast %13 : vector<1x128xf32> to vector<8x128xf32>
    %16 = arith.mulf %14, %15 : vector<8x128xf32>
    %17 = vector.extract_strided_slice %0 {offsets = [0, 1], sizes = [8, 1], strides = [1, 1]} : vector<8x2xf32> to vector<8x1xf32>
    %18 = vector.extract_strided_slice %11 {offsets = [1, 0], sizes = [1, 128], strides = [1, 1]} : vector<8x128xf32> to vector<1x128xf32>
    %19 = vector.broadcast %17 : vector<8x1xf32> to vector<8x128xf32>
    %20 = vector.broadcast %18 : vector<1x128xf32> to vector<8x128xf32>
    %21 = arith.mulf %19, %20 : vector<8x128xf32>
    %22 = arith.addf %16, %21 : vector<8x128xf32>
    %cst = arith.constant dense<0.000000e+00> : vector<128xf32>
    %23 = vector.multi_reduction <add>, %22, %cst [0] : vector<8x128xf32> to vector<128xf32>
    %24 = vector.shape_cast %23 : vector<128xf32> to vector<1x128xf32>
    %cst_4 = arith.constant 1.250000e-01 : f32
    %25 = vector.broadcast %cst_4 : f32 to vector<1x128xf32>
    %26 = arith.mulf %24, %25 : vector<1x128xf32>
    %27 = arith.mulf %22, %22 : vector<8x128xf32>
    %cst_5 = arith.constant dense<0.000000e+00> : vector<128xf32>
    %28 = vector.multi_reduction <add>, %27, %cst_5 [0] : vector<8x128xf32> to vector<128xf32>
    %29 = vector.shape_cast %28 : vector<128xf32> to vector<1x128xf32>
    %cst_6 = arith.constant 1.250000e-01 : f32
    %30 = vector.broadcast %cst_6 : f32 to vector<1x128xf32>
    %31 = arith.mulf %29, %30 : vector<1x128xf32>
    %32 = arith.mulf %26, %26 : vector<1x128xf32>
    %33 = arith.subf %31, %32 : vector<1x128xf32>
    %cst_7 = arith.constant 0.000000e+00 : f32
    %34 = vector.broadcast %cst_7 : f32 to vector<1x128xf32>
    %35 = arith.maximumf %33, %34 : vector<1x128xf32>
    %cst_8 = arith.constant 9.99999974E-6 : f32
    %36 = vector.broadcast %cst_8 : f32 to vector<1x128xf32>
    %37 = arith.addf %35, %36 : vector<1x128xf32>
    %38 = math.rsqrt %37 : vector<1x128xf32>
    %39 = arith.mulf %38, %2 : vector<1x128xf32>
    %40 = arith.mulf %26, %39 : vector<1x128xf32>
    %41 = arith.subf %3, %40 : vector<1x128xf32>
    %42 = vector.broadcast %39 : vector<1x128xf32> to vector<8x128xf32>
    %43 = arith.mulf %22, %42 : vector<8x128xf32>
    %44 = vector.broadcast %41 : vector<1x128xf32> to vector<8x128xf32>
    %45 = arith.addf %43, %44 : vector<8x128xf32>
    %cst_9 = arith.constant 0.000000e+00 : f32
    %46 = vector.broadcast %cst_9 : f32 to vector<8x128xf32>
    %47 = arith.maximumf %45, %46 : vector<8x128xf32>
    %48 = vector.extract_strided_slice %47 {offsets = [0, 0], sizes = [8, 16], strides = [1, 1]} : vector<8x128xf32> to vector<8x16xf32>
    %c8 = arith.constant 8 : index
    %c0_10 = arith.constant 0 : index
    %49 = vector.load %arg1[%c8, %c0_10] : memref<136x128xf32, #tpu.memory_space<vmem>>, vector<16x128xf32>
    %cst_11 = arith.constant dense<0.000000e+00> : vector<8x128xf32>
    %50 = tpu.matmul %48, %49, %cst_11 {dimension_numbers = #tpu.dot_dimension_numbers<[1], [0], [0], [1], [0, 0, 1, 1], [], []>} : vector<8x16xf32>, vector<16x128xf32>, vector<8x128xf32> -> vector<8x128xf32>
    %cst_12 = arith.constant dense<0.000000e+00> : vector<128xf32>
    %51 = vector.multi_reduction <add>, %50, %cst_12 [0] : vector<8x128xf32> to vector<128xf32>
    %52 = vector.shape_cast %51 : vector<128xf32> to vector<1x128xf32>
    %cst_13 = arith.constant 1.250000e-01 : f32
    %53 = vector.broadcast %cst_13 : f32 to vector<1x128xf32>
    %54 = arith.mulf %52, %53 : vector<1x128xf32>
    %55 = arith.mulf %50, %50 : vector<8x128xf32>
    %cst_14 = arith.constant dense<0.000000e+00> : vector<128xf32>
    %56 = vector.multi_reduction <add>, %55, %cst_14 [0] : vector<8x128xf32> to vector<128xf32>
    %57 = vector.shape_cast %56 : vector<128xf32> to vector<1x128xf32>
    %cst_15 = arith.constant 1.250000e-01 : f32
    %58 = vector.broadcast %cst_15 : f32 to vector<1x128xf32>
    %59 = arith.mulf %57, %58 : vector<1x128xf32>
    %60 = arith.mulf %54, %54 : vector<1x128xf32>
    %61 = arith.subf %59, %60 : vector<1x128xf32>
    %cst_16 = arith.constant 0.000000e+00 : f32
    %62 = vector.broadcast %cst_16 : f32 to vector<1x128xf32>
    %63 = arith.maximumf %61, %62 : vector<1x128xf32>
    %cst_17 = arith.constant 9.99999974E-6 : f32
    %64 = vector.broadcast %cst_17 : f32 to vector<1x128xf32>
    %65 = arith.addf %63, %64 : vector<1x128xf32>
    %66 = math.rsqrt %65 : vector<1x128xf32>
    %67 = arith.mulf %66, %4 : vector<1x128xf32>
    %68 = arith.mulf %54, %67 : vector<1x128xf32>
    %69 = arith.subf %5, %68 : vector<1x128xf32>
    %70 = vector.broadcast %67 : vector<1x128xf32> to vector<8x128xf32>
    %71 = arith.mulf %50, %70 : vector<8x128xf32>
    %72 = vector.broadcast %69 : vector<1x128xf32> to vector<8x128xf32>
    %73 = arith.addf %71, %72 : vector<8x128xf32>
    %cst_18 = arith.constant 0.000000e+00 : f32
    %74 = vector.broadcast %cst_18 : f32 to vector<8x128xf32>
    %75 = arith.maximumf %73, %74 : vector<8x128xf32>
    %76 = vector.extract_strided_slice %75 {offsets = [0, 0], sizes = [8, 32], strides = [1, 1]} : vector<8x128xf32> to vector<8x32xf32>
    %c24 = arith.constant 24 : index
    %c0_19 = arith.constant 0 : index
    %77 = vector.load %arg1[%c24, %c0_19] : memref<136x128xf32, #tpu.memory_space<vmem>>, vector<32x128xf32>
    %cst_20 = arith.constant dense<0.000000e+00> : vector<8x128xf32>
    %78 = tpu.matmul %76, %77, %cst_20 {dimension_numbers = #tpu.dot_dimension_numbers<[1], [0], [0], [1], [0, 0, 1, 1], [], []>} : vector<8x32xf32>, vector<32x128xf32>, vector<8x128xf32> -> vector<8x128xf32>
    %cst_21 = arith.constant dense<0.000000e+00> : vector<128xf32>
    %79 = vector.multi_reduction <add>, %78, %cst_21 [0] : vector<8x128xf32> to vector<128xf32>
    %80 = vector.shape_cast %79 : vector<128xf32> to vector<1x128xf32>
    %cst_22 = arith.constant 1.250000e-01 : f32
    %81 = vector.broadcast %cst_22 : f32 to vector<1x128xf32>
    %82 = arith.mulf %80, %81 : vector<1x128xf32>
    %83 = arith.mulf %78, %78 : vector<8x128xf32>
    %cst_23 = arith.constant dense<0.000000e+00> : vector<128xf32>
    %84 = vector.multi_reduction <add>, %83, %cst_23 [0] : vector<8x128xf32> to vector<128xf32>
    %85 = vector.shape_cast %84 : vector<128xf32> to vector<1x128xf32>
    %cst_24 = arith.constant 1.250000e-01 : f32
    %86 = vector.broadcast %cst_24 : f32 to vector<1x128xf32>
    %87 = arith.mulf %85, %86 : vector<1x128xf32>
    %88 = arith.mulf %82, %82 : vector<1x128xf32>
    %89 = arith.subf %87, %88 : vector<1x128xf32>
    %cst_25 = arith.constant 0.000000e+00 : f32
    %90 = vector.broadcast %cst_25 : f32 to vector<1x128xf32>
    %91 = arith.maximumf %89, %90 : vector<1x128xf32>
    %cst_26 = arith.constant 9.99999974E-6 : f32
    %92 = vector.broadcast %cst_26 : f32 to vector<1x128xf32>
    %93 = arith.addf %91, %92 : vector<1x128xf32>
    %94 = math.rsqrt %93 : vector<1x128xf32>
    %95 = arith.mulf %94, %6 : vector<1x128xf32>
    %96 = arith.mulf %82, %95 : vector<1x128xf32>
    %97 = arith.subf %7, %96 : vector<1x128xf32>
    %98 = vector.broadcast %95 : vector<1x128xf32> to vector<8x128xf32>
    %99 = arith.mulf %78, %98 : vector<8x128xf32>
    %100 = vector.broadcast %97 : vector<1x128xf32> to vector<8x128xf32>
    %101 = arith.addf %99, %100 : vector<8x128xf32>
    %cst_27 = arith.constant 0.000000e+00 : f32
    %102 = vector.broadcast %cst_27 : f32 to vector<8x128xf32>
    %103 = arith.maximumf %101, %102 : vector<8x128xf32>
    %104 = vector.extract_strided_slice %103 {offsets = [0, 0], sizes = [8, 32], strides = [1, 1]} : vector<8x128xf32> to vector<8x32xf32>
    %c56 = arith.constant 56 : index
    %c0_28 = arith.constant 0 : index
    %105 = vector.load %arg1[%c56, %c0_28] : memref<136x128xf32, #tpu.memory_space<vmem>>, vector<32x128xf32>
    %cst_29 = arith.constant dense<0.000000e+00> : vector<8x128xf32>
    %106 = tpu.matmul %104, %105, %cst_29 {dimension_numbers = #tpu.dot_dimension_numbers<[1], [0], [0], [1], [0, 0, 1, 1], [], []>} : vector<8x32xf32>, vector<32x128xf32>, vector<8x128xf32> -> vector<8x128xf32>
    %cst_30 = arith.constant dense<0.000000e+00> : vector<128xf32>
    %107 = vector.multi_reduction <add>, %106, %cst_30 [0] : vector<8x128xf32> to vector<128xf32>
    %108 = vector.shape_cast %107 : vector<128xf32> to vector<1x128xf32>
    %cst_31 = arith.constant 1.250000e-01 : f32
    %109 = vector.broadcast %cst_31 : f32 to vector<1x128xf32>
    %110 = arith.mulf %108, %109 : vector<1x128xf32>
    %111 = arith.mulf %106, %106 : vector<8x128xf32>
    %cst_32 = arith.constant dense<0.000000e+00> : vector<128xf32>
    %112 = vector.multi_reduction <add>, %111, %cst_32 [0] : vector<8x128xf32> to vector<128xf32>
    %113 = vector.shape_cast %112 : vector<128xf32> to vector<1x128xf32>
    %cst_33 = arith.constant 1.250000e-01 : f32
    %114 = vector.broadcast %cst_33 : f32 to vector<1x128xf32>
    %115 = arith.mulf %113, %114 : vector<1x128xf32>
    %116 = arith.mulf %110, %110 : vector<1x128xf32>
    %117 = arith.subf %115, %116 : vector<1x128xf32>
    %cst_34 = arith.constant 0.000000e+00 : f32
    %118 = vector.broadcast %cst_34 : f32 to vector<1x128xf32>
    %119 = arith.maximumf %117, %118 : vector<1x128xf32>
    %cst_35 = arith.constant 9.99999974E-6 : f32
    %120 = vector.broadcast %cst_35 : f32 to vector<1x128xf32>
    %121 = arith.addf %119, %120 : vector<1x128xf32>
    %122 = math.rsqrt %121 : vector<1x128xf32>
    %123 = arith.mulf %122, %8 : vector<1x128xf32>
    %124 = arith.mulf %110, %123 : vector<1x128xf32>
    %125 = arith.subf %9, %124 : vector<1x128xf32>
    %126 = vector.broadcast %123 : vector<1x128xf32> to vector<8x128xf32>
    %127 = arith.mulf %106, %126 : vector<8x128xf32>
    %128 = vector.broadcast %125 : vector<1x128xf32> to vector<8x128xf32>
    %129 = arith.addf %127, %128 : vector<8x128xf32>
    %130 = arith.addf %129, %75 : vector<8x128xf32>
    %cst_36 = arith.constant 0.000000e+00 : f32
    %131 = vector.broadcast %cst_36 : f32 to vector<8x128xf32>
    %132 = arith.maximumf %130, %131 : vector<8x128xf32>
    %133 = vector.extract_strided_slice %132 {offsets = [0, 0], sizes = [8, 32], strides = [1, 1]} : vector<8x128xf32> to vector<8x32xf32>
    %c88 = arith.constant 88 : index
    %c0_37 = arith.constant 0 : index
    %134 = vector.load %arg1[%c88, %c0_37] : memref<136x128xf32, #tpu.memory_space<vmem>>, vector<32x128xf32>
    %cst_38 = arith.constant dense<0.000000e+00> : vector<8x128xf32>
    %135 = tpu.matmul %133, %134, %cst_38 {dimension_numbers = #tpu.dot_dimension_numbers<[1], [0], [0], [1], [0, 0, 1, 1], [], []>} : vector<8x32xf32>, vector<32x128xf32>, vector<8x128xf32> -> vector<8x128xf32>
    %136 = vector.broadcast %10 : vector<1x128xf32> to vector<8x128xf32>
    %137 = arith.addf %135, %136 : vector<8x128xf32>
    %c0_39 = arith.constant 0 : index
    %c0_40 = arith.constant 0 : index
    %138 = vector.load %arg2[%c0_39, %c0_40] : memref<8x128xf32, #tpu.memory_space<vmem>>, vector<8x128xf32>
    tpu.vector_store %arg2[%c0_39, %c0_40], %137 {strides = array<i32>} : memref<8x128xf32, #tpu.memory_space<vmem>>, vector<8x128xf32>,
    return
  }
}

</mosaic_0001>

<llo_original>
// kernel: teacher_forward.1
$region0: #{teacher_forward.1}
  #allocation0 [shape = 'u32[]', space=smem, size = 0x4, offset = 0x4, fixed_abs, tag = 'smem constant byte address 0x4 - core index']
  #allocation1 [shape = 'u32[72,128]{1,0:T(1,128)}', space=vmem, size = 0x9000, scoped, tag = 'internal scratch']
  %s0 = inlined_call_operand.vmem [shape: f32[8,2], index: 0, kind: input, shape index: {}]
  %s1 = inlined_call_operand.hbm [shape: f32[136,128], index: 1, kind: input, shape index: {}]
  %s2 = inlined_call_operand.vmem [shape: f32[8,128], index: 2, kind: output, shape index: {}]
  %s3 = sld [smem:[#allocation0]]
  $region22: #{teacher_forward.1} parent=0
    _
  %s5 = ssub.s32 1, %s3
  %s6 = scalar_select 0, %s5, %s3
  $region1: #{teacher_forward.1} parent=0
    #allocation2 [shape = 'u8[69632]{0}', space=vmem, size = 0x11000, scoped, tag = 'input window, operand 1, single buffered']
    #allocation3 [shape = 's32[1]{0}', space=sflag, size = 0x4, scoped, tag = 'scoped memory for teacher_forward.1']
    %7 = vsyncpa [#allocation3], 0
    // Predicated region
    $region2: #{teacher_forward.1} parent=1 // pred_check
      _
    $region3: #{teacher_forward.1} parent=1 // pred_check_branch
      %9 = sbr.rel (0) target = $region5
    $region4: #{teacher_forward.1} parent=1 // pred_region
      _
    $region5: #{teacher_forward.1} parent=1 // pred_fallthru
      _
    // Predicated region
    $region6: #{teacher_forward.1} parent=1 // pred_check
      _
    $region7: #{teacher_forward.1} parent=1 // pred_check_branch
      %11 = sbr.rel (0) target = $region9
    $region8: #{teacher_forward.1} parent=1 // pred_region
      %13 = vsyncadd [#allocation3], 0
      %s14 = sshll.u32 %s1, 4
      %s15 = int_to_ptr.hbm [resolvable:$true] %s14
      %s16 = sshll.u32 [#allocation2], 4
      %s17 = int_to_ptr.vmem [resolvable:$true] %s16
      %22 = dma.hbm_to_vmem [thread:$0]  %s15, 2176, %s17, [#allocation3], 128, 128, 8
    $region9: #{teacher_forward.1} parent=1 // pred_fallthru
      _
    // Predicated region
    $region10: #{teacher_forward.1} parent=1 // pred_check
      _
    $region11: #{teacher_forward.1} parent=1 // pred_check_branch
      %24 = sbr.rel (0) target = $region13
    $region12: #{teacher_forward.1} parent=1 // pred_region
      %26 = dma.done [#allocation3], 2176
    $region13: #{teacher_forward.1} parent=1 // pred_fallthru
      _
    %v27 = vld [vmem:[%s0] sm:$0xff]
    %v28 = vld [vmem:[#allocation2 + $0x78] sm:$0xff]
    %v29 = vld [vmem:[#allocation2 + $0x80] sm:$0xff]
    %v30 = vld [vmem:[#allocation2] sm:$0xff]
    %32 = vset.pattern.permute.xlu0 0
    %33 = vperm.xlu0 %32, %v27
    %v34 = vpop.permute.xlu0 %33
    %v36 = vperm.slane %v30, 0
    %v37 = vmul.f32 %v34, %v36
    %38 = vset.pattern.permute.xlu0 1
    %39 = vperm.xlu0 %38, %v27
    %v40 = vpop.permute.xlu0 %39
    %v42 = vperm.slane %v30, 1
    %v43 = vmul.f32 %v40, %v42
    %v44 = vadd.f32 %v37, %v43
    %v45 = vrot.slane %v44, 4
    %v46 = vadd.f32 %v44, %v45
    %v47 = vrot.slane %v46, 2
    %v48 = vadd.f32 %v46, %v47
    %v49 = vrot.slane %v48, 1
    %v50 = vadd.f32 %v48, %v49
    %v51 = vmul.f32 %v50, 0.125
    %v52 = vmul.f32 %v44, %v44
    %v53 = vrot.slane %v52, 4
    %v54 = vadd.f32 %v52, %v53
    %v55 = vrot.slane %v54, 2
    %v56 = vadd.f32 %v54, %v55
    %v57 = vrot.slane %v56, 1
    %v58 = vadd.f32 %v56, %v57
    %v59 = vmul.f32 %v58, 0.125
    %v60 = vmul.f32 %v51, %v51
    %v61 = vsub.f32 %v59, %v60
    %v62 = vmax.f32 %v61, 0.0
    %v63 = vadd.f32 %v62, 1e-05
    %v64 = vrsqrt.pop %v63
    %v65 = vmul.f32 %v64, %v63
    %v66 = vmul.f32 %v65, %v64
    %v67 = vmul.f32 0.5, %v66
    %v68 = vsub.f32 1.5, %v67
    %v69 = vmul.f32 %v64, %v68
    %vm70 = vweird.f32 %v63
    %vm71 = vweird.f32 %v64
    %vm72 = vmor %vm70, %vm71
    %v73 = vsel %vm72, %v64, %v69
    %v74 = vmul.f32 %v73, %v28
    %v75 = vmul.f32 %v51, %v74
    %v77 = vrot.slane %v75, 7
    %v79 = vsub.f32 %v28, %v77
    %v80 = vperm.slane %v74, 0
    %v81 = vmul.f32 %v44, %v80
    %v82 = vperm.slane %v79, 1
    %v83 = vadd.f32 %v81, %v82
    %v84 = vmax.f32 %v83, 0.0
    %v85 = vld [vmem:[#allocation2 + $0x8] sm:$0xff]
    %v86 = vld [vmem:[#allocation2 + $0x10] sm:$0xff]
    %vm87 = vcmask 130048
    %v89 = vsel %vm87, %v84, 0
    %91 = vmatpush.msra.mxu0 0.0
    %92 = vmatpush.msra.mxu0 0.0
    %93 = vmatpush.msra.mxu0 0.0
    %94 = vmatpush.msra.mxu0 0.0
    %95 = vmatpush.msra.mxu0 0.0
    %96 = vmatpush.msra.mxu0 0.0
    %97 = vmatpush.msra.mxu0 0.0
    %98 = vmatpush.msra.mxu0 0.0
    %99 = vmatpush.msra.mxu0 0.0
    %100 = vmatpush.msra.mxu0 0.0
    %101 = vmatpush.msra.mxu0 0.0
    %102 = vmatpush.msra.mxu0 0.0
    %103 = vmatpush.msra.mxu0 0.0
    %104 = vmatpush.msra.mxu0 0.0
    %105 = vmatpush.msra.mxu0 %v86
    %106 = vmatpush.msra.mxu0 %v85
    %107 = vmatmul.f32.gmra.mxu0 %v89
    %v108 = vpop.f32.mrf.mxu0
    %v109 = vadd.f32 0.0, %v108
    %110 = vdwg.mxu0
    %v111 = vrot.slane %v109, 4
    %v112 = vadd.f32 %v109, %v111
    %v113 = vrot.slane %v112, 2
    %v114 = vadd.f32 %v112, %v113
    %v115 = vrot.slane %v114, 1
    %v116 = vadd.f32 %v114, %v115
    %v117 = vmul.f32 %v116, 0.125
    %v118 = vmul.f32 %v109, %v109
    %v119 = vrot.slane %v118, 4
    %v120 = vadd.f32 %v118, %v119
    %v121 = vrot.slane %v120, 2
    %v122 = vadd.f32 %v120, %v121
    %v123 = vrot.slane %v122, 1
    %v124 = vadd.f32 %v122, %v123
    %v125 = vmul.f32 %v124, 0.125
    %v126 = vmul.f32 %v117, %v117
    %v127 = vsub.f32 %v125, %v126
    %v128 = vmax.f32 %v127, 0.0
    %v129 = vadd.f32 %v128, 1e-05
    %v130 = vrsqrt.pop %v129
    %v131 = vmul.f32 %v130, %v129
    %v132 = vmul.f32 %v131, %v130
    %v133 = vmul.f32 0.5, %v132
    %v134 = vsub.f32 1.5, %v133
    %v135 = vmul.f32 %v130, %v134
    %vm136 = vweird.f32 %v129
    %vm137 = vweird.f32 %v130
    %vm138 = vmor %vm136, %vm137
    %v139 = vsel %vm138, %v130, %v135
    %v140 = vmul.f32 %v139, %v28
    %v141 = vmul.f32 %v117, %v140
    %v143 = vrot.slane %v141, 7
    %v145 = vsub.f32 %v28, %v143
    %v146 = vperm.slane %v140, 2
    %v147 = vmul.f32 %v109, %v146
    %v148 = vperm.slane %v145, 3
    %v149 = vadd.f32 %v147, %v148
    %v150 = vmax.f32 %v149, 0.0
    %v151 = vld [vmem:[#allocation2 + $0x18] sm:$0xff]
    %v152 = vld [vmem:[#allocation2 + $0x20] sm:$0xff]
    %v153 = vld [vmem:[#allocation2 + $0x28] sm:$0xff]
    %v154 = vld [vmem:[#allocation2 + $0x30] sm:$0xff]
    %vm155 = vcmask 261120
    %v157 = vsel %vm155, %v150, 0
    %159 = vmatpush.msra.mxu0 0.0
    %160 = vmatpush.msra.mxu0 0.0
    %161 = vmatpush.msra.mxu0 0.0
    %162 = vmatpush.msra.mxu0 0.0
    %163 = vmatpush.msra.mxu0 0.0
    %164 = vmatpush.msra.mxu0 0.0
    %165 = vmatpush.msra.mxu0 0.0
    %166 = vmatpush.msra.mxu0 0.0
    %167 = vmatpush.msra.mxu0 0.0
    %168 = vmatpush.msra.mxu0 0.0
    %169 = vmatpush.msra.mxu0 0.0
    %170 = vmatpush.msra.mxu0 0.0
    %171 = vmatpush.msra.mxu0 %v154
    %172 = vmatpush.msra.mxu0 %v153
    %173 = vmatpush.msra.mxu0 %v152
    %174 = vmatpush.msra.mxu0 %v151
    %175 = vmatmul.f32.gmra.mxu0 %v157
    %v176 = vpop.f32.mrf.mxu0
    %v177 = vadd.f32 0.0, %v176
    %178 = vdwg.mxu0
    %v179 = vrot.slane %v177, 4
    %v180 = vadd.f32 %v177, %v179
    %v181 = vrot.slane %v180, 2
    %v182 = vadd.f32 %v180, %v181
    %v183 = vrot.slane %v182, 1
    %v184 = vadd.f32 %v182, %v183
    %v185 = vmul.f32 %v184, 0.125
    %v186 = vmul.f32 %v177, %v177
    %v187 = vrot.slane %v186, 4
    %v188 = vadd.f32 %v186, %v187
    %v189 = vrot.slane %v188, 2
    %v190 = vadd.f32 %v188, %v189
    %v191 = vrot.slane %v190, 1
    %v192 = vadd.f32 %v190, %v191
    %v193 = vmul.f32 %v192, 0.125
    %v194 = vmul.f32 %v185, %v185
    %v195 = vsub.f32 %v193, %v194
    %v196 = vmax.f32 %v195, 0.0
    %v197 = vadd.f32 %v196, 1e-05
    %v198 = vrsqrt.pop %v197
    %v199 = vmul.f32 %v198, %v197
    %v200 = vmul.f32 %v199, %v198
    %v201 = vmul.f32 0.5, %v200
    %v202 = vsub.f32 1.5, %v201
    %v203 = vmul.f32 %v198, %v202
    %vm204 = vweird.f32 %v197
    %vm205 = vweird.f32 %v198
    %vm206 = vmor %vm204, %vm205
    %v207 = vsel %vm206, %v198, %v203
    %v208 = vmul.f32 %v207, %v28
    %v209 = vmul.f32 %v185, %v208
    %v211 = vrot.slane %v209, 7
    %v213 = vsub.f32 %v28, %v211
    %v214 = vperm.slane %v208, 4
    %v215 = vmul.f32 %v177, %v214
    %v216 = vperm.slane %v213, 5
    %v217 = vadd.f32 %v215, %v216
    %v218 = vmax.f32 %v217, 0.0
    %v219 = vld [vmem:[#allocation2 + $0x38] sm:$0xff]
    %v220 = vld [vmem:[#allocation2 + $0x40] sm:$0xff]
    %v221 = vld [vmem:[#allocation2 + $0x48] sm:$0xff]
    %v222 = vld [vmem:[#allocation2 + $0x50] sm:$0xff]
    %v224 = vsel %vm155, %v218, 0
    %226 = vmatpush.msra.mxu0 0.0
    %227 = vmatpush.msra.mxu0 0.0
    %228 = vmatpush.msra.mxu0 0.0
    %229 = vmatpush.msra.mxu0 0.0
    %230 = vmatpush.msra.mxu0 0.0
    %231 = vmatpush.msra.mxu0 0.0
    %232 = vmatpush.msra.mxu0 0.0
    %233 = vmatpush.msra.mxu0 0.0
    %234 = vmatpush.msra.mxu0 0.0
    %235 = vmatpush.msra.mxu0 0.0
    %236 = vmatpush.msra.mxu0 0.0
    %237 = vmatpush.msra.mxu0 0.0
    %238 = vmatpush.msra.mxu0 %v222
    %239 = vmatpush.msra.mxu0 %v221
    %240 = vmatpush.msra.mxu0 %v220
    %241 = vmatpush.msra.mxu0 %v219
    %242 = vmatmul.f32.gmra.mxu0 %v224
    %v243 = vpop.f32.mrf.mxu0
    %v244 = vadd.f32 0.0, %v243
    %245 = vdwg.mxu0
    %v246 = vrot.slane %v244, 4
    %v247 = vadd.f32 %v244, %v246
    %v248 = vrot.slane %v247, 2
    %v249 = vadd.f32 %v247, %v248
    %v250 = vrot.slane %v249, 1
    %v251 = vadd.f32 %v249, %v250
    %v252 = vmul.f32 %v251, 0.125
    %v253 = vmul.f32 %v244, %v244
    %v254 = vrot.slane %v253, 4
    %v255 = vadd.f32 %v253, %v254
    %v256 = vrot.slane %v255, 2
    %v257 = vadd.f32 %v255, %v256
    %v258 = vrot.slane %v257, 1
    %v259 = vadd.f32 %v257, %v258
    %v260 = vmul.f32 %v259, 0.125
    %v261 = vmul.f32 %v252, %v252
    %v262 = vsub.f32 %v260, %v261
    %v263 = vmax.f32 %v262, 0.0
    %v264 = vadd.f32 %v263, 1e-05
    %v265 = vrsqrt.pop %v264
    %v266 = vmul.f32 %v265, %v264
    %v267 = vmul.f32 %v266, %v265
    %v268 = vmul.f32 0.5, %v267
    %v269 = vsub.f32 1.5, %v268
    %v270 = vmul.f32 %v265, %v269
    %vm271 = vweird.f32 %v264
    %vm272 = vweird.f32 %v265
    %vm273 = vmor %vm271, %vm272
    %v274 = vsel %vm273, %v265, %v270
    %v275 = vmul.f32 %v274, %v28
    %v276 = vmul.f32 %v252, %v275
    %v278 = vrot.slane %v276, 7
    %v280 = vsub.f32 %v28, %v278
    %v281 = vperm.slane %v275, 6
    %v282 = vmul.f32 %v244, %v281
    %v283 = vperm.slane %v280, 7
    %v284 = vadd.f32 %v282, %v283
    %v285 = vadd.f32 %v284, %v150
    %v286 = vmax.f32 %v285, 0.0
    %v287 = vld [vmem:[#allocation2 + $0x58] sm:$0xff]
    %v288 = vld [vmem:[#allocation2 + $0x60] sm:$0xff]
    %v289 = vld [vmem:[#allocation2 + $0x68] sm:$0xff]
    %v290 = vld [vmem:[#allocation2 + $0x70] sm:$0xff]
    %v291 = vperm.slane %v29, 0
    %v293 = vsel %vm155, %v286, 0
    %295 = vmatpush.msra.mxu0 0.0
    %296 = vmatpush.msra.mxu0 0.0
    %297 = vmatpush.msra.mxu0 0.0
    %298 = vmatpush.msra.mxu0 0.0
    %299 = vmatpush.msra.mxu0 0.0
    %300 = vmatpush.msra.mxu0 0.0
    %301 = vmatpush.msra.mxu0 0.0
    %302 = vmatpush.msra.mxu0 0.0
    %303 = vmatpush.msra.mxu0 0.0
    %304 = vmatpush.msra.mxu0 0.0
    %305 = vmatpush.msra.mxu0 0.0
    %306 = vmatpush.msra.mxu0 0.0
    %307 = vmatpush.msra.mxu0 %v290
    %308 = vmatpush.msra.mxu0 %v289
    %309 = vmatpush.msra.mxu0 %v288
    %310 = vmatpush.msra.mxu0 %v287
    %311 = vmatmul.f32.gmra.mxu0 %v293
    %v312 = vpop.f32.mrf.mxu0
    %v313 = vadd.f32 %v291, %v312
    %314 = vdwg.mxu0
    %315 = vst [vmem:[%s2] sm:$0xff] %v313
    // Predicated region
    $region14: #{teacher_forward.1} parent=1 // pred_check
      _
    $region15: #{teacher_forward.1} parent=1 // pred_check_branch
      %317 = sbr.rel (0) target = $region17
    $region16: #{teacher_forward.1} parent=1 // pred_region
      _
    $region17: #{teacher_forward.1} parent=1 // pred_fallthru
      _
    // Predicated region
    $region18: #{teacher_forward.1} parent=1 // pred_check
      _
    $region19: #{teacher_forward.1} parent=1 // pred_check_branch
      %319 = sbr.rel (0) target = $region21
    $region20: #{teacher_forward.1} parent=1 // pred_region
      _
    $region21: #{teacher_forward.1} parent=1 // pred_fallthru
      _
    %320 = vsyncpa [#allocation3], 1

</llo_original>
